<compile_context>
chip_gen: v7x
topology: tpu7x:2x2x1
jax: 0.10.0
libtpu: 0.0.40
codegen_flags: <defaults>
</compile_context>

<pallas_src>
import functools

import numpy as np
import jax
import jax.numpy as jnp
from jax.experimental import pallas as pl
from jax.experimental.pallas import tpu as pltpu


def _triplet_kernel(x_ref, o_ref, *, margin, n_neg, nq, tile_t):
    """One grid step: TILE_T tuples, block layout (S, TILE_T, D).

    Writes this step's partial loss (broadcast over an (8,128) vreg) to its own
    output block, so the grid axis can be 'parallel'.
    """
    i = pl.program_id(0)

    # Anchor / positive: leading-dim index of the (S, T, D) block -> (T, D) views.
    xa = x_ref[0].astype(jnp.float32)                            # (T, D)
    xp = x_ref[1].astype(jnp.float32)                            # (T, D)

    # dist_pos computed once per tuple (not once per negative).
    d_ap = xa - xp
    dist_pos = jnp.sum(d_ap * d_ap, axis=1, keepdims=True)       # (T, 1)

    # Mask rows of zero-padded tuples in the ragged last tile.
    row = jax.lax.broadcasted_iota(jnp.int32, (tile_t, 1), 0)
    valid = (i * tile_t + row) < nq                               # (T, 1) bool

    tile_sum = jnp.zeros((tile_t, 1), jnp.float32)
    for j in range(n_neg):                                        # static, small
        xn = x_ref[2 + j].astype(jnp.float32)                     # (T, D)
        d_an = xa - xn
        dist_neg = jnp.sum(d_an * d_an, axis=1, keepdims=True)    # (T, 1)
        tile_sum = tile_sum + jnp.maximum(dist_pos - dist_neg + margin, 0.0)

    tile_sum = jnp.where(valid, tile_sum, 0.0)
    partial = jnp.sum(tile_sum)                                   # scalar, f32
    o_ref[...] = jnp.broadcast_to(partial, o_ref.shape)


def _choose_tile_t(nq, S, D, itemsize):
    """Tuples per grid step, from a generation-aware VMEM budget.

    Double-buffered (S, T, D) input stream kept to ~1/4 of per-core VMEM,
    capped at 32 MiB so v6e's large VMEM does not produce a tile that fails
    on v7x's 64 MiB, and leaving headroom for in-kernel f32 temporaries.
    """
    try:
        vmem_cap = int(getattr(pltpu.get_tpu_info(), "vmem_capacity_bytes",
                               128 << 20))
    except Exception:  # hardware query unavailable (e.g. interpret mode)
        vmem_cap = 128 << 20
    budget = max(8 << 20, min(vmem_cap // 4, 32 << 20))
    bytes_per_tuple = S * D * itemsize * 2          # x2: double buffering
    t = int(budget // max(bytes_per_tuple, 1))
    t = max(16, t - (t % 16))                       # multiple of 16 (bf16 packing)
    nq_pad16 = ((nq + 15) // 16) * 16
    return min(t, nq_pad16), vmem_cap


def _triplet_loss_pallas(xt, margin, nq, S, n_neg, tile_t, vmem_cap):
    _, nq_pad, D = xt.shape
    num_tiles = nq_pad // tile_t
    itemsize = xt.dtype.itemsize

    kernel = functools.partial(
        _triplet_kernel, margin=float(margin), n_neg=n_neg, nq=nq, tile_t=tile_t)

    # Explicit VMEM limit: double-buffered input block + f32 temporaries + slack.
    in_bytes = 2 * S * tile_t * D * itemsize
    tmp_bytes = 6 * tile_t * D * 4
    vmem_limit = in_bytes + tmp_bytes + (4 << 20)
    vmem_limit = int(min(max(vmem_limit, 32 << 20),
                         max(vmem_cap - (8 << 20), 16 << 20)))

    cost = pl.CostEstimate(
        flops=int(3 * D * nq * (1 + n_neg) + 4 * nq * n_neg),
        transcendentals=0,
        bytes_accessed=int(S * nq_pad * D * itemsize + num_tiles * 8 * 128 * 4),
    )

    partials = pl.pallas_call(
        kernel,
        out_shape=jax.ShapeDtypeStruct((num_tiles, 8, 128), jnp.float32),
        grid_spec=pltpu.PrefetchScalarGridSpec(
            num_scalar_prefetch=0,
            grid=(num_tiles,),
            in_specs=[
                # One contiguous (S, tile_t, D) slab per step: anchors/positives/
                # negatives of tile_t tuples in a single DMA descriptor.
                pl.BlockSpec((S, tile_t, D), lambda i: (0, i, 0)),
            ],
            # Per-step partial sum -> independent output block per grid step.
            out_specs=pl.BlockSpec((1, 8, 128), lambda i: (i, 0, 0)),
        ),
        compiler_params=pltpu.CompilerParams(
            dimension_semantics=("parallel",),   # both TCs on v7x
            vmem_limit_bytes=vmem_limit),
        cost_estimate=cost,
    )(xt)

    return jnp.sum(partials[:, 0, 0])


def triplet_loss(x, label, margin=0.1, stream_dtype=None):
    """Pallas TPU implementation of LF.triplet_loss.

    x: (D, N) array; label: (N,) values in {-1, 0, 1}.  Tuples are assumed
    contiguous and ordered [query, positive, negatives...] (the layout produced
    by cnnimageretrieval-pytorch's TuplesDataset).  `label` is consumed at
    trace time (host-side), matching the data-dependent PyTorch reference.
    stream_dtype: optional narrower dtype (e.g. jnp.bfloat16) for HBM streaming;
    accumulation stays in f32 in-kernel.
    """
    x = jnp.asarray(x)
    label_np = np.asarray(label)
    D, N = x.shape

    nq = int(np.sum(label_np == -1))           # number of tuples
    S = N // nq                                # images per tuple
    n_neg = S - 2                              # negatives per tuple

    # Single XLA transpose (no per-role gather, no replication):
    #   x (D, N=nq*S)  ->  (D, nq, S)  ->  (S, nq, D)
    # so xt[0, t] = anchor_t, xt[1, t] = positive_t, xt[2+j, t] = negative_{t,j}.
    xt = jnp.transpose(x.reshape(D, nq, S), (2, 1, 0))   # (S, nq, D)
    if stream_dtype is not None:
        xt = xt.astype(stream_dtype)

    tile_t, vmem_cap = _choose_tile_t(nq, S, D, xt.dtype.itemsize)
    nq_pad = ((nq + tile_t - 1) // tile_t) * tile_t
    if nq_pad != nq:
        xt = jnp.pad(xt, ((0, 0), (0, nq_pad - nq), (0, 0)))

    return _triplet_loss_pallas(xt, margin, nq, S, n_neg, tile_t, vmem_cap)


def _reference_triplet_loss(x, label, margin=0.1):
    """Pure-numpy reference mirroring the PyTorch implementation."""
    x = np.asarray(x, dtype=np.float64)
    label = np.asarray(label)
    D, N = x.shape
    nq = int(np.sum(label == -1))
    S = N // nq
    n_neg = S - 2
    xa = x[:, np.repeat(np.where(label == -1)[0], n_neg)]
    xp = x[:, np.repeat(np.where(label == 1)[0], n_neg)]
    xn = x[:, np.where(label == 0)[0]]
    dist_pos = np.sum((xa - xp) ** 2, axis=0)
    dist_neg = np.sum((xa - xn) ** 2, axis=0)
    return float(np.sum(np.clip(dist_pos - dist_neg + margin, 0.0, None)))


if __name__ == "__main__":
    key = jax.random.PRNGKey(0)

    # Small problem: nq=2 tuples, S=5 images per tuple (1 query + 1 pos + 3 negs),
    # feature dim D=32  ->  x is (D, N) = (32, 10)
    D, nq, S = 32, 2, 5
    N = nq * S

    x = jax.random.normal(key, (D, N), dtype=jnp.float32)
    # L2-normalize columns (as the retrieval pipeline does before the loss)
    x = x / jnp.linalg.norm(x, axis=0, keepdims=True)

    label = np.tile(np.array([-1, 1] + [0] * (S - 2), dtype=np.int32), nq)  # (N,)

    margin = 0.1
    loss = triplet_loss(x, label, margin=margin)
    loss = jax.block_until_ready(loss)

    ref = _reference_triplet_loss(np.asarray(x), label, margin=margin)
    assert abs(float(loss) - ref) < 1e-4, (float(loss), ref)

    print("KERNEL_OK")
</pallas_src>

<mosaic_0001>
module attributes {stable_mosaic.version = 11 : i64} {
  func.func @_triplet_kernel(%arg0: i32, %arg1: memref<5x16x32xf32, #tpu.memory_space<vmem>>, %arg2: memref<1x8x128xf32, #tpu.memory_space<vmem>>) attributes {dimension_semantics = [#tpu.dimension_semantics<parallel>], iteration_bounds = array<i64: 1>, scalar_prefetch = 0 : i64, scratch_operands = 0 : i64, tpu.core_type = #tpu.core_type<tc>, window_params = [{transform_indices = @transform_0, window_bounds = array<i64: 5, 16, 32>}, {transform_indices = @transform_1, window_bounds = array<i64: 1, 8, 128>}]} {
    %c0 = arith.constant 0 : index
    %c0_0 = arith.constant 0 : index
    %c0_1 = arith.constant 0 : index
    %0 = vector.load %arg1[%c0, %c0_0, %c0_1] : memref<5x16x32xf32, #tpu.memory_space<vmem>>, vector<1x16x32xf32>
    %1 = vector.shape_cast %0 : vector<1x16x32xf32> to vector<16x32xf32>
    %c1 = arith.constant 1 : index
    %c0_2 = arith.constant 0 : index
    %c0_3 = arith.constant 0 : index
    %2 = vector.load %arg1[%c1, %c0_2, %c0_3] : memref<5x16x32xf32, #tpu.memory_space<vmem>>, vector<1x16x32xf32>
    %3 = vector.shape_cast %2 : vector<1x16x32xf32> to vector<16x32xf32>
    %4 = arith.subf %1, %3 : vector<16x32xf32>
    %5 = arith.mulf %4, %4 : vector<16x32xf32>
    %cst = arith.constant dense<0.000000e+00> : vector<16xf32>
    %6 = vector.multi_reduction <add>, %5, %cst [1] : vector<16x32xf32> to vector<16xf32>
    %7 = vector.shape_cast %6 : vector<16xf32> to vector<16x1xf32>
    %8 = tpu.iota {dimensions = array<i32: 0>} : vector<16x1xi32>
    %c16_i32 = arith.constant 16 : i32
    %9 = arith.muli %arg0, %c16_i32 : i32
    %10 = vector.broadcast %9 : i32 to vector<16x1xi32>
    %11 = arith.addi %10, %8 : vector<16x1xi32>
    %c2_i32 = arith.constant 2 : i32
    %12 = vector.broadcast %c2_i32 : i32 to vector<16x1xi32>
    %13 = arith.cmpi slt, %11, %12 : vector<16x1xi32>
    %cst_4 = arith.constant 0.000000e+00 : f32
    %14 = vector.broadcast %cst_4 : f32 to vector<16x1xf32>
    %c2 = arith.constant 2 : index
    %c0_5 = arith.constant 0 : index
    %c0_6 = arith.constant 0 : index
    %15 = vector.load %arg1[%c2, %c0_5, %c0_6] : memref<5x16x32xf32, #tpu.memory_space<vmem>>, vector<1x16x32xf32>
    %16 = vector.shape_cast %15 : vector<1x16x32xf32> to vector<16x32xf32>
    %17 = arith.subf %1, %16 : vector<16x32xf32>
    %18 = arith.mulf %17, %17 : vector<16x32xf32>
    %cst_7 = arith.constant dense<0.000000e+00> : vector<16xf32>
    %19 = vector.multi_reduction <add>, %18, %cst_7 [1] : vector<16x32xf32> to vector<16xf32>
    %20 = vector.shape_cast %19 : vector<16xf32> to vector<16x1xf32>
    %21 = arith.subf %7, %20 : vector<16x1xf32>
    %cst_8 = arith.constant 1.000000e-01 : f32
    %22 = vector.broadcast %cst_8 : f32 to vector<16x1xf32>
    %23 = arith.addf %21, %22 : vector<16x1xf32>
    %cst_9 = arith.constant 0.000000e+00 : f32
    %24 = vector.broadcast %cst_9 : f32 to vector<16x1xf32>
    %25 = arith.maximumf %23, %24 : vector<16x1xf32>
    %26 = arith.addf %14, %25 : vector<16x1xf32>
    %c3 = arith.constant 3 : index
    %c0_10 = arith.constant 0 : index
    %c0_11 = arith.constant 0 : index
    %27 = vector.load %arg1[%c3, %c0_10, %c0_11] : memref<5x16x32xf32, #tpu.memory_space<vmem>>, vector<1x16x32xf32>
    %28 = vector.shape_cast %27 : vector<1x16x32xf32> to vector<16x32xf32>
    %29 = arith.subf %1, %28 : vector<16x32xf32>
    %30 = arith.mulf %29, %29 : vector<16x32xf32>
    %cst_12 = arith.constant dense<0.000000e+00> : vector<16xf32>
    %31 = vector.multi_reduction <add>, %30, %cst_12 [1] : vector<16x32xf32> to vector<16xf32>
    %32 = vector.shape_cast %31 : vector<16xf32> to vector<16x1xf32>
    %33 = arith.subf %7, %32 : vector<16x1xf32>
    %cst_13 = arith.constant 1.000000e-01 : f32
    %34 = vector.broadcast %cst_13 : f32 to vector<16x1xf32>
    %35 = arith.addf %33, %34 : vector<16x1xf32>
    %cst_14 = arith.constant 0.000000e+00 : f32
    %36 = vector.broadcast %cst_14 : f32 to vector<16x1xf32>
    %37 = arith.maximumf %35, %36 : vector<16x1xf32>
    %38 = arith.addf %26, %37 : vector<16x1xf32>
    %c4 = arith.constant 4 : index
    %c0_15 = arith.constant 0 : index
    %c0_16 = arith.constant 0 : index
    %39 = vector.load %arg1[%c4, %c0_15, %c0_16] : memref<5x16x32xf32, #tpu.memory_space<vmem>>, vector<1x16x32xf32>
    %40 = vector.shape_cast %39 : vector<1x16x32xf32> to vector<16x32xf32>
    %41 = arith.subf %1, %40 : vector<16x32xf32>
    %42 = arith.mulf %41, %41 : vector<16x32xf32>
    %cst_17 = arith.constant dense<0.000000e+00> : vector<16xf32>
    %43 = vector.multi_reduction <add>, %42, %cst_17 [1] : vector<16x32xf32> to vector<16xf32>
    %44 = vector.shape_cast %43 : vector<16xf32> to vector<16x1xf32>
    %45 = arith.subf %7, %44 : vector<16x1xf32>
    %cst_18 = arith.constant 1.000000e-01 : f32
    %46 = vector.broadcast %cst_18 : f32 to vector<16x1xf32>
    %47 = arith.addf %45, %46 : vector<16x1xf32>
    %cst_19 = arith.constant 0.000000e+00 : f32
    %48 = vector.broadcast %cst_19 : f32 to vector<16x1xf32>
    %49 = arith.maximumf %47, %48 : vector<16x1xf32>
    %50 = arith.addf %38, %49 : vector<16x1xf32>
    %cst_20 = arith.constant 0.000000e+00 : f32
    %51 = vector.broadcast %cst_20 : f32 to vector<16x1xf32>
    %52 = arith.select %13, %50, %51 : vector<16x1xi1>, vector<16x1xf32>
    %53 = vector.shape_cast %52 : vector<16x1xf32> to vector<1x16x1xf32>
    %cst_21 = arith.constant dense<0.000000e+00> : vector<1xf32>
    %54 = vector.multi_reduction <add>, %53, %cst_21 [1, 2] : vector<1x16x1xf32> to vector<1xf32>
    %55 = vector.shape_cast %54 : vector<1xf32> to vector<1x1x1xf32>
    %56 = vector.extract %55[0, 0, 0] : f32 from vector<1x1x1xf32>
    %57 = vector.broadcast %56 : f32 to vector<1x8x128xf32>
    %c0_22 = arith.constant 0 : index
    %c0_23 = arith.constant 0 : index
    %c0_24 = arith.constant 0 : index
    %58 = vector.load %arg2[%c0_22, %c0_23, %c0_24] : memref<1x8x128xf32, #tpu.memory_space<vmem>>, vector<1x8x128xf32>
    tpu.vector_store %arg2[%c0_22, %c0_23, %c0_24], %57 {strides = array<i32>} : memref<1x8x128xf32, #tpu.memory_space<vmem>>, vector<1x8x128xf32>,
    return
  }
  func.func @transform_0(%arg0: i32) -> (i32, i32, i32) {
    %c0_i32 = arith.constant 0 : i32
    %c0_i32_0 = arith.constant 0 : i32
    %c0_i32_1 = arith.constant 0 : i32
    return %c0_i32, %arg0, %c0_i32_0 : i32, i32, i32
  }
  func.func @transform_1(%arg0: i32) -> (i32, i32, i32) {
    %c0_i32 = arith.constant 0 : i32
    %c0_i32_0 = arith.constant 0 : i32
    %c0_i32_1 = arith.constant 0 : i32
    return %arg0, %c0_i32, %c0_i32_0 : i32, i32, i32
  }
}

</mosaic_0001>

<llo_original>
// kernel: tpu_custom_call.1
$region0: #{tpu_custom_call.1}
  #allocation0 [shape = 'u32[]', space=smem, size = 0x4, offset = 0x4, fixed_abs, tag = 'smem constant byte address 0x4 - core index']
  #allocation1 [shape = 'u32[144,128]{1,0:T(1,128)}', space=vmem, size = 0x12000, scoped, tag = 'internal scratch']
  %s0 = inlined_call_operand.hbm [shape: f32[5,16,32], index: 0, kind: input, shape index: {}]
  %s1 = inlined_call_operand.hbm [shape: f32[1,8,128], index: 1, kind: output, shape index: {}]
  %s2 = sld [smem:[#allocation0]]
  $region18: #{tpu_custom_call.1} parent=0
    _
  %s4 = ssub.s32 1, %s2
  %s5 = scalar_select 0, %s4, %s2
  $region1: #{tpu_custom_call.1} parent=0
    #allocation2 [shape = 'u8[40960]{0}', space=vmem, size = 0xa000, scoped, tag = 'input window, operand 0, single buffered']
    #allocation3 [shape = 's32[1]{0}', space=sflag, size = 0x4, scoped, tag = 'scoped memory for tpu_custom_call.1']
    #allocation4 [shape = 's32[1]{0}', space=sflag, size = 0x4, scoped, tag = 'scoped memory for tpu_custom_call.1']
    #allocation5 [shape = 'u8[4096]{0}', space=vmem, size = 0x1000, scoped, tag = 'output window, operand 0, single buffered']
    %6 = vsyncpa [#allocation3], 0
    %7 = vsyncpa [#allocation4], 0
    // Predicated region
    $region2: #{tpu_custom_call.1} parent=1 // pred_check
      _
    $region3: #{tpu_custom_call.1} parent=1 // pred_check_branch
      %9 = sbr.rel (0) target = $region5
    $region4: #{tpu_custom_call.1} parent=1 // pred_region
      %s11 = ssub.s32 1280, 1280
      %12 = vsyncadd [#allocation3], %s11
      %s13 = sshll.u32 [#allocation2], 4
      %s14 = int_to_ptr.vmem [resolvable:$true] %s13
      %19 = dma.hbm_to_vmem [thread:$0]  %s0, 1280, %s14, [#allocation3], 128, 128, 8
    $region5: #{tpu_custom_call.1} parent=1 // pred_fallthru
      _
    // Predicated region
    $region6: #{tpu_custom_call.1} parent=1 // pred_check
      _
    $region7: #{tpu_custom_call.1} parent=1 // pred_check_branch
      %21 = sbr.rel (0) target = $region9
    $region8: #{tpu_custom_call.1} parent=1 // pred_region
      %22 = dma.done [#allocation3], 1280
    $region9: #{tpu_custom_call.1} parent=1 // pred_fallthru
      _
    %v23 = vld [vmem:[#allocation2] sm:$0xff]
    %v24 = vld [vmem:[#allocation2 + $0x8] sm:$0xff]
    %s25 = scalar_lea.vmem [#allocation2], 16
    %v26 = vld [vmem:[%s25] sm:$0xff]
    %v27 = vld [vmem:[%s25 + $0x8] sm:$0xff]
    %v28 = vsub.f32 %v23, %v26
    %v29 = vsub.f32 %v24, %v27
    %v30 = vmul.f32 %v28, %v28
    %v31 = vmul.f32 %v29, %v29
    %vm32 = vcmask 261120
    %v33 = vsel %vm32, %v30, 0.0
    %34 = vadd.xlane.f32.xlu0 %v33
    %v35 = vpop.xlane.xlu0 %34
    %v36 = vsel %vm32, %v31, 0.0
    %37 = vadd.xlane.f32.xlu0 %v36
    %v38 = vpop.xlane.xlu0 %37
    %v39 = vlaneseq
    %v40 = vshrl.u32 %v39, 7
    %v41 = vadd.s32 %v40, 8
    %s42 = smul.u32 0, 16
    %v43 = vstv %s42
    %v44 = vadd.s32 %v43, %v40
    %v45 = vadd.s32 %v43, %v41
    %vm46 = vcmp.lt.s32.totalorder %v44, 2
    %vm47 = vcmp.lt.s32.totalorder %v45, 2
    %s48 = scalar_lea.vmem [#allocation2], 32
    %v49 = vld [vmem:[%s48] sm:$0xff]
    %v50 = vld [vmem:[%s48 + $0x8] sm:$0xff]
    %v51 = vsub.f32 %v23, %v49
    %v52 = vsub.f32 %v24, %v50
    %v53 = vmul.f32 %v51, %v51
    %v54 = vmul.f32 %v52, %v52
    %v55 = vsel %vm32, %v53, 0.0
    %56 = vadd.xlane.f32.xlu0 %v55
    %v57 = vpop.xlane.xlu0 %56
    %v58 = vsel %vm32, %v54, 0.0
    %59 = vadd.xlane.f32.xlu0 %v58
    %v60 = vpop.xlane.xlu0 %59
    %v61 = vsub.f32 %v35, %v57
    %v62 = vsub.f32 %v38, %v60
    %v63 = vadd.f32 %v61, 0.1
    %v64 = vadd.f32 %v62, 0.1
    %v65 = vmax.f32 %v63, 0.0
    %v66 = vmax.f32 %v64, 0.0
    %v67 = vadd.f32 %v65, 0.0
    %v68 = vadd.f32 %v66, 0.0
    %s69 = scalar_lea.vmem [#allocation2], 48
    %v70 = vld [vmem:[%s69] sm:$0xff]
    %v71 = vld [vmem:[%s69 + $0x8] sm:$0xff]
    %v72 = vsub.f32 %v23, %v70
    %v73 = vsub.f32 %v24, %v71
    %v74 = vmul.f32 %v72, %v72
    %v75 = vmul.f32 %v73, %v73
    %v76 = vsel %vm32, %v74, 0.0
    %77 = vadd.xlane.f32.xlu0 %v76
    %v78 = vpop.xlane.xlu0 %77
    %v79 = vsel %vm32, %v75, 0.0
    %80 = vadd.xlane.f32.xlu0 %v79
    %v81 = vpop.xlane.xlu0 %80
    %v82 = vsub.f32 %v35, %v78
    %v83 = vsub.f32 %v38, %v81
    %v84 = vadd.f32 %v82, 0.1
    %v85 = vadd.f32 %v83, 0.1
    %v86 = vmax.f32 %v84, 0.0
    %v87 = vmax.f32 %v85, 0.0
    %v88 = vadd.f32 %v67, %v86
    %v89 = vadd.f32 %v68, %v87
    %s90 = scalar_lea.vmem [#allocation2], 64
    %v91 = vld [vmem:[%s90] sm:$0xff]
    %v92 = vld [vmem:[%s90 + $0x8] sm:$0xff]
    %v93 = vsub.f32 %v23, %v91
    %v94 = vsub.f32 %v24, %v92
    %v95 = vmul.f32 %v93, %v93
    %v96 = vmul.f32 %v94, %v94
    %v97 = vsel %vm32, %v95, 0.0
    %98 = vadd.xlane.f32.xlu0 %v97
    %v99 = vpop.xlane.xlu0 %98
    %v100 = vsel %vm32, %v96, 0.0
    %101 = vadd.xlane.f32.xlu0 %v100
    %v102 = vpop.xlane.xlu0 %101
    %v103 = vsub.f32 %v35, %v99
    %v104 = vsub.f32 %v38, %v102
    %v105 = vadd.f32 %v103, 0.1
    %v106 = vadd.f32 %v104, 0.1
    %v107 = vmax.f32 %v105, 0.0
    %v108 = vmax.f32 %v106, 0.0
    %v109 = vadd.f32 %v88, %v107
    %v110 = vadd.f32 %v89, %v108
    %v111 = vsel %vm46, %v109, 0.0
    %v112 = vsel %vm47, %v110, 0.0
    %vm113 = vcmask 7168
    %v114 = vsel %vm113, %v111, 0.0
    %v115 = vsel %vm113, %v112, 0.0
    %v116 = vadd.f32 %v114, %v115
    %117 = vadd.xlane.f32.xlu0 %v116
    %v118 = vpop.xlane.xlu0 %117
    %v119 = vrot.slane %v118, 4
    %v120 = vadd.f32 %v118, %v119
    %v121 = vrot.slane %v120, 2
    %v122 = vadd.f32 %v120, %v121
    %v123 = vrot.slane %v122, 1
    %v124 = vadd.f32 %v122, %v123
    %s125 = vtos %v124
    %v126 = vstv %s125
    %127 = vst [vmem:[#allocation5] sm:$0xff] %v126
    // Predicated region
    $region10: #{tpu_custom_call.1} parent=1 // pred_check
      _
    $region11: #{tpu_custom_call.1} parent=1 // pred_check_branch
      %129 = sbr.rel (0) target = $region13
    $region12: #{tpu_custom_call.1} parent=1 // pred_region
      %s131 = ssub.s32 128, 128
      %132 = vsyncadd [#allocation4], %s131
      %s134 = sshll.u32 [#allocation5], 4
      %s135 = int_to_ptr.vmem [resolvable:$true] %s134
      %137 = dma.vmem_to_hbm [thread:$0]  %s135, 128, %s1, [#allocation4]
    $region13: #{tpu_custom_call.1} parent=1 // pred_fallthru
      _
    // Predicated region
    $region14: #{tpu_custom_call.1} parent=1 // pred_check
      _
    $region15: #{tpu_custom_call.1} parent=1 // pred_check_branch
      %139 = sbr.rel (0) target = $region17
    $region16: #{tpu_custom_call.1} parent=1 // pred_region
      %140 = dma.done [#allocation4], 128
    $region17: #{tpu_custom_call.1} parent=1 // pred_fallthru
      _
    %141 = vsyncpa [#allocation3], 1
    %142 = vsyncpa [#allocation4], 1

</llo_original>
